<compile_context>
chip_gen: v7x
topology: tpu7x:2x2x1
jax: 0.10.0
libtpu: 0.0.40
codegen_flags: <defaults>
</compile_context>

<pallas_src>
import functools

import jax
import jax.numpy as jnp
from jax import lax
from jax.experimental import pallas as pl
from jax.experimental.pallas import tpu as pltpu

_LANES = 128
_ACC_ROWS = 64                     # partial-accumulator height (breaks serial fold dep)
_TARGET_BLOCK_BYTES = 512 * 1024   # ~512 KiB input DMA per grid step


def _cdiv(a: int, b: int) -> int:
    return -(-a // b)


def _device_kind() -> str:
    try:
        return jax.devices()[0].device_kind.lower()
    except Exception:
        return ""


def _bce_logits_sum_kernel(x_ref, out_ref, *, label_val, n_total, tm, acc_rows,
                           blocks_per_shard, total_blocks, has_phantom,
                           compute_dtype):
    """Stable BCE-with-logits vs a constant label, per-shard partial sums.

    loss(x, y) = max(x, 0) - x*y + log1p(exp(-|x|))

    out_ref is an (acc_rows, 128) f32 block whose index is constant along the
    streaming ("arbitrary") axis, so it stays resident in VMEM and acts as the
    accumulator. The final tiny reduce + scale happens in the wrapper.
    """
    c = pl.program_id(0)            # shard axis ("parallel")
    i = pl.program_id(1)            # streaming/reduction axis ("arbitrary")

    @pl.when(i == 0)
    def _():
        out_ref[...] = jnp.zeros_like(out_ref)

    blk = c * blocks_per_shard + i  # linear block id

    def accumulate():
        x = x_ref[...].astype(compute_dtype)
        loss = (jnp.maximum(x, 0) - x * label_val
                + jnp.log1p(jnp.exp(-jnp.abs(x)))).astype(jnp.float32)

        def fold(v):
            # VPU fold of the (tm,128) block down to the (acc_rows,128) accumulator.
            return v.reshape(tm // acc_rows, acc_rows, _LANES).sum(axis=0)

        block_start = blk * (tm * _LANES)
        block_end = block_start + tm * _LANES

        # Fast path: block fully inside the real data -> no masking work.
        @pl.when(block_end <= n_total)
        def _():
            out_ref[...] += fold(loss)

        # Tail path: block overlaps padding / clamped rows -> mask by global index.
        @pl.when(block_end > n_total)
        def _():
            grow = blk * tm + lax.broadcasted_iota(jnp.int32, (tm, 1), 0)   # (tm,1)
            lane = lax.broadcasted_iota(jnp.int32, (1, _LANES), 1)          # (1,128)
            full_rows = n_total // _LANES
            rem = n_total % _LANES
            valid = (grow < full_rows) | ((grow == full_rows) & (lane < rem))
            out_ref[...] += fold(jnp.where(valid, loss, 0.0))

    if has_phantom:
        # Grid is rectangular; trailing "phantom" iterations of the last shard
        # re-read an in-bounds block (see index_map) and contribute nothing.
        pl.when(blk < total_blocks)(accumulate)
    else:
        accumulate()


class VanillaGANLoss:
    """JAX/Pallas port of the PyTorch VanillaGANLoss module (forward only)."""

    def __init__(self, loss_weight: float, real_label: float = 1.0,
                 fake_label: float = 0.0, loss_reduction: str = "mean"):
        assert loss_reduction == "mean", "only 'mean' reduction implemented"
        self.lamb_gan = float(loss_weight)
        self.real_label_val = float(real_label)
        self.fake_label_val = float(fake_label)
        kind = _device_kind()
        # Two TensorCores behind one JAX device: v4/v5p megacore and v7x.
        self._num_shards = 2 if any(t in kind for t in ("v4", "v5p", "v7")) else 1
        # bf16 VALU/EUP only on v6e / v7x.
        self._bf16_compute_ok = ("v6" in kind) or ("v7" in kind)

    def __call__(self, x: jax.Array, is_real: bool, is_disc: bool = False) -> jax.Array:
        label_val = self.real_label_val if is_real else self.fake_label_val
        scale = 1.0 if is_disc else self.lamb_gan
        orig_dtype = x.dtype
        itemsize = jnp.dtype(x.dtype).itemsize

        n = int(x.size)
        if n == 0:
            raise ValueError("empty input")
        if n >= 2 ** 31 - (1 << 23):
            raise NotImplementedError("int32 tail-mask indices would overflow")

        compute_dtype = (jnp.bfloat16
                         if (x.dtype == jnp.bfloat16 and self._bf16_compute_ok)
                         else jnp.float32)

        rows = _cdiv(n, _LANES)
        flat = x.reshape(-1)
        if n % _LANES:
            # Only lane-unaligned inputs pay a pad (and only to the next multiple
            # of 128); lane-aligned sizes are a pure (free) reshape.
            flat = jnp.pad(flat, (0, rows * _LANES - n))
        x2d = flat.reshape(rows, _LANES)

        # dtype-scaled block height: ~512 KiB per input block, multiple of _ACC_ROWS.
        tm_max = max(_ACC_ROWS,
                     (_TARGET_BLOCK_BYTES // (_LANES * itemsize)) // _ACC_ROWS * _ACC_ROWS)

        if rows <= _ACC_ROWS:
            # Tiny input: a single block equal to the full array dims (always legal).
            num_shards, blocks_per_shard, total_blocks = 1, 1, 1
            tm, acc_rows = rows, rows
        else:
            num_shards = self._num_shards
            rows_per_shard = _cdiv(rows, num_shards)
            # tm: multiple of _ACC_ROWS, never larger than the array rows.
            tm = min(tm_max, max(_ACC_ROWS, (rows_per_shard // _ACC_ROWS) * _ACC_ROWS))
            acc_rows = _ACC_ROWS
            total_blocks = _cdiv(rows, tm)
            num_shards = min(num_shards, total_blocks)
            blocks_per_shard = _cdiv(total_blocks, num_shards)

        has_phantom = num_shards * blocks_per_shard != total_blocks
        if has_phantom:
            # Clamp phantom block ids onto an in-bounds block; the kernel gates
            # their contribution off, so they are only a (rare) wasted DMA.
            def in_index(c, i):
                return ((c * blocks_per_shard + i) % total_blocks, 0)
        else:
            def in_index(c, i):
                return (c * blocks_per_shard + i, 0)

        kernel = functools.partial(
            _bce_logits_sum_kernel,
            label_val=label_val, n_total=n, tm=tm, acc_rows=acc_rows,
            blocks_per_shard=blocks_per_shard, total_blocks=total_blocks,
            has_phantom=has_phantom, compute_dtype=compute_dtype)

        partials = pl.pallas_call(
            kernel,
            out_shape=jax.ShapeDtypeStruct((num_shards * acc_rows, _LANES), jnp.float32),
            grid_spec=pltpu.PrefetchScalarGridSpec(
                num_scalar_prefetch=0,
                grid=(num_shards, blocks_per_shard),
                in_specs=[pl.BlockSpec((tm, _LANES), in_index)],
                out_specs=pl.BlockSpec((acc_rows, _LANES), lambda c, i: (c, 0)),
            ),
            compiler_params=pltpu.CompilerParams(
                dimension_semantics=("parallel", "arbitrary")),
            cost_estimate=pl.CostEstimate(
                flops=7 * n,
                transcendentals=2 * n,
                bytes_accessed=n * itemsize + num_shards * acc_rows * _LANES * 4),
        )(x2d)

        total = jnp.sum(partials, dtype=jnp.float32)
        return (total * (scale / float(n))).astype(orig_dtype)


def _reference(x, label_val, scale):
    xf = x.astype(jnp.float32)
    loss = jnp.maximum(xf, 0.0) - xf * label_val + jnp.log1p(jnp.exp(-jnp.abs(xf)))
    return scale * jnp.mean(loss)


if __name__ == "__main__":
    key = jax.random.PRNGKey(0)
    loss_mod = VanillaGANLoss(loss_weight=0.5, real_label=1.0, fake_label=0.0)

    cases = []
    # 1) Canonical discriminator-logit map, lane-aligned (zero-copy wrapper path).
    x1 = jax.random.normal(jax.random.fold_in(key, 0), (2, 4, 16, 16), jnp.float32)
    cases.append((x1, True, False))    # generator-side "real" loss (scaled by lamb_gan)
    cases.append((x1, False, True))    # discriminator-side "fake" loss (unscaled)
    # 2) Lane-unaligned size -> exercises the in-kernel tail mask.
    x2 = jax.random.normal(jax.random.fold_in(key, 1), (2, 3, 7, 11), jnp.float32)
    cases.append((x2, True, True))
    # 3) Multi-block input with a partial last block (clamped DMA + mask path).
    x3 = jax.random.normal(jax.random.fold_in(key, 2), (2, 4, 40, 64), jnp.float32)
    cases.append((x3, False, False))

    for x, is_real, is_disc in cases:
        out = loss_mod(x, is_real=is_real, is_disc=is_disc)
        jax.block_until_ready(out)
        lbl = 1.0 if is_real else 0.0
        sc = 1.0 if is_disc else 0.5
        ref = _reference(x, lbl, sc)
        assert jnp.allclose(out, ref, rtol=1e-5, atol=1e-5), (x.shape, out, ref)

    print("KERNEL_OK")
</pallas_src>

<mosaic_0001>
module attributes {stable_mosaic.version = 11 : i64} {
  func.func @_bce_logits_sum_kernel(%arg0: i32, %arg1: i32, %arg2: memref<16x128xf32, #tpu.memory_space<vmem>>, %arg3: memref<16x128xf32, #tpu.memory_space<vmem>>) attributes {dimension_semantics = [#tpu.dimension_semantics<parallel>, #tpu.dimension_semantics<arbitrary>], iteration_bounds = array<i64: 1, 1>, scalar_prefetch = 0 : i64, scratch_operands = 0 : i64, tpu.core_type = #tpu.core_type<tc>, window_params = [{transform_indices = @transform_0, window_bounds = array<i64: 16, 128>}, {transform_indices = @transform_1, window_bounds = array<i64: 16, 128>}]} {
    %c0_i32 = arith.constant 0 : i32
    %0 = arith.cmpi eq, %arg1, %c0_i32 : i32
    %1 = arith.extui %0 : i1 to i32
    %c0_i32_0 = arith.constant 0 : i32
    %2 = arith.cmpi ne, %1, %c0_i32_0 : i32
    scf.if %2 {
      %cst_9 = arith.constant 0.000000e+00 : f32
      %25 = vector.broadcast %cst_9 : f32 to vector<16x128xf32>
      %c0_10 = arith.constant 0 : index
      %c0_11 = arith.constant 0 : index
      %26 = vector.load %arg3[%c0_10, %c0_11] : memref<16x128xf32, #tpu.memory_space<vmem>>, vector<16x128xf32>
      tpu.vector_store %arg3[%c0_10, %c0_11], %25 {strides = array<i32>} : memref<16x128xf32, #tpu.memory_space<vmem>>, vector<16x128xf32>,
    } else {
    }
    %c1_i32 = arith.constant 1 : i32
    %3 = arith.muli %arg0, %c1_i32 : i32
    %4 = arith.addi %3, %arg1 : i32
    %c0 = arith.constant 0 : index
    %c0_1 = arith.constant 0 : index
    %5 = vector.load %arg2[%c0, %c0_1] : memref<16x128xf32, #tpu.memory_space<vmem>>, vector<16x128xf32>
    %cst = arith.constant 0.000000e+00 : f32
    %6 = vector.broadcast %cst : f32 to vector<16x128xf32>
    %7 = arith.maximumf %5, %6 : vector<16x128xf32>
    %cst_2 = arith.constant 1.000000e+00 : f32
    %8 = vector.broadcast %cst_2 : f32 to vector<16x128xf32>
    %9 = arith.mulf %5, %8 : vector<16x128xf32>
    %10 = arith.subf %7, %9 : vector<16x128xf32>
    %11 = math.absf %5 : vector<16x128xf32>
    %cst_3 = arith.constant 0.000000e+00 : f32
    %12 = vector.broadcast %cst_3 : f32 to vector<16x128xf32>
    %13 = arith.subf %12, %11 : vector<16x128xf32>
    %14 = math.exp %13 : vector<16x128xf32>
    %15 = math.log1p %14 : vector<16x128xf32>
    %16 = arith.addf %10, %15 : vector<16x128xf32>
    %c2048_i32 = arith.constant 2048 : i32
    %17 = arith.muli %4, %c2048_i32 : i32
    %c2048_i32_4 = arith.constant 2048 : i32
    %18 = arith.addi %17, %c2048_i32_4 : i32
    %c2048_i32_5 = arith.constant 2048 : i32
    %19 = arith.cmpi sle, %18, %c2048_i32_5 : i32
    %20 = arith.extui %19 : i1 to i32
    %c0_i32_6 = arith.constant 0 : i32
    %21 = arith.cmpi ne, %20, %c0_i32_6 : i32
    scf.if %21 {
      %c0_9 = arith.constant 0 : index
      %c0_10 = arith.constant 0 : index
      %25 = vector.load %arg3[%c0_9, %c0_10] : memref<16x128xf32, #tpu.memory_space<vmem>>, vector<16x128xf32>
      %26 = vector.shape_cast %16 : vector<16x128xf32> to vector<1x16x128xf32>
      %cst_11 = arith.constant dense<0.000000e+00> : vector<16x128xf32>
      %27 = vector.multi_reduction <add>, %26, %cst_11 [0] : vector<1x16x128xf32> to vector<16x128xf32>
      %28 = arith.addf %25, %27 : vector<16x128xf32>
      %c0_12 = arith.constant 0 : index
      %c0_13 = arith.constant 0 : index
      %29 = vector.load %arg3[%c0_12, %c0_13] : memref<16x128xf32, #tpu.memory_space<vmem>>, vector<16x128xf32>
      tpu.vector_store %arg3[%c0_12, %c0_13], %28 {strides = array<i32>} : memref<16x128xf32, #tpu.memory_space<vmem>>, vector<16x128xf32>,
    } else {
    }
    %c2048_i32_7 = arith.constant 2048 : i32
    %22 = arith.cmpi sgt, %18, %c2048_i32_7 : i32
    %23 = arith.extui %22 : i1 to i32
    %c0_i32_8 = arith.constant 0 : i32
    %24 = arith.cmpi ne, %23, %c0_i32_8 : i32
    scf.if %24 {
      %c16_i32 = arith.constant 16 : i32
      %25 = arith.muli %4, %c16_i32 : i32
      %26 = tpu.iota {dimensions = array<i32: 0>} : vector<16x1xi32>
      %27 = vector.broadcast %25 : i32 to vector<16x1xi32>
      %28 = arith.addi %27, %26 : vector<16x1xi32>
      %29 = tpu.iota {dimensions = array<i32: 1>} : vector<1x128xi32>
      %c16_i32_9 = arith.constant 16 : i32
      %30 = vector.broadcast %c16_i32_9 : i32 to vector<16x1xi32>
      %31 = arith.cmpi slt, %28, %30 : vector<16x1xi32>
      %c16_i32_10 = arith.constant 16 : i32
      %32 = vector.broadcast %c16_i32_10 : i32 to vector<16x1xi32>
      %33 = arith.cmpi eq, %28, %32 : vector<16x1xi32>
      %c0_i32_11 = arith.constant 0 : i32
      %34 = vector.broadcast %c0_i32_11 : i32 to vector<1x128xi32>
      %35 = arith.cmpi slt, %29, %34 : vector<1x128xi32>
      %36 = vector.broadcast %33 : vector<16x1xi1> to vector<16x128xi1>
      %37 = vector.broadcast %35 : vector<1x128xi1> to vector<16x128xi1>
      %38 = arith.andi %36, %37 : vector<16x128xi1>
      %39 = vector.broadcast %31 : vector<16x1xi1> to vector<16x128xi1>
      %40 = arith.ori %39, %38 : vector<16x128xi1>
      %c0_12 = arith.constant 0 : index
      %c0_13 = arith.constant 0 : index
      %41 = vector.load %arg3[%c0_12, %c0_13] : memref<16x128xf32, #tpu.memory_space<vmem>>, vector<16x128xf32>
      %cst_14 = arith.constant 0.000000e+00 : f32
      %42 = vector.broadcast %cst_14 : f32 to vector<16x128xf32>
      %43 = arith.select %40, %16, %42 : vector<16x128xi1>, vector<16x128xf32>
      %44 = vector.shape_cast %43 : vector<16x128xf32> to vector<1x16x128xf32>
      %cst_15 = arith.constant dense<0.000000e+00> : vector<16x128xf32>
      %45 = vector.multi_reduction <add>, %44, %cst_15 [0] : vector<1x16x128xf32> to vector<16x128xf32>
      %46 = arith.addf %41, %45 : vector<16x128xf32>
      %c0_16 = arith.constant 0 : index
      %c0_17 = arith.constant 0 : index
      %47 = vector.load %arg3[%c0_16, %c0_17] : memref<16x128xf32, #tpu.memory_space<vmem>>, vector<16x128xf32>
      tpu.vector_store %arg3[%c0_16, %c0_17], %46 {strides = array<i32>} : memref<16x128xf32, #tpu.memory_space<vmem>>, vector<16x128xf32>,
    } else {
    }
    return
  }
  func.func @transform_0(%arg0: i32, %arg1: i32) -> (i32, i32) {
    %c1_i32 = arith.constant 1 : i32
    %0 = arith.muli %arg0, %c1_i32 : i32
    %1 = arith.addi %0, %arg1 : i32
    %c0_i32 = arith.constant 0 : i32
    %c0_i32_0 = arith.constant 0 : i32
    return %1, %c0_i32 : i32, i32
  }
  func.func @transform_1(%arg0: i32, %arg1: i32) -> (i32, i32) {
    %c0_i32 = arith.constant 0 : i32
    %c0_i32_0 = arith.constant 0 : i32
    return %arg0, %c0_i32 : i32, i32
  }
}

</mosaic_0001>

<llo_original>
// kernel: tpu_custom_call.1
$region0: #{tpu_custom_call.1}
  #allocation0 [shape = 'u32[]', space=smem, size = 0x4, offset = 0x4, fixed_abs, tag = 'smem constant byte address 0x4 - core index']
  #allocation1 [shape = 'u32[144,128]{1,0:T(1,128)}', space=vmem, size = 0x12000, scoped, tag = 'internal scratch']
  %s0 = inlined_call_operand.hbm [shape: f32[16,128], index: 0, kind: input, shape index: {}]
  %s1 = inlined_call_operand.hbm [shape: f32[16,128], index: 1, kind: output, shape index: {}]
  %s2 = sld [smem:[#allocation0]]
  $region30: #{tpu_custom_call.1} parent=0
    _
  %s4 = ssub.s32 1, %s2
  %s5 = scalar_select 0, %s4, %s2
  $region1: #{tpu_custom_call.1} parent=0
    #allocation2 [shape = 'u8[8192]{0}', space=vmem, size = 0x2000, scoped, tag = 'input window, operand 0, single buffered']
    #allocation3 [shape = 's32[1]{0}', space=sflag, size = 0x4, scoped, tag = 'scoped memory for tpu_custom_call.1']
    #allocation4 [shape = 's32[1]{0}', space=sflag, size = 0x4, scoped, tag = 'scoped memory for tpu_custom_call.1']
    #allocation5 [shape = 'u8[8192]{0}', space=vmem, size = 0x2000, scoped, tag = 'output window, operand 0, single buffered']
    %6 = vsyncpa [#allocation3], 0
    %7 = vsyncpa [#allocation4], 0
    // Predicated region
    $region2: #{tpu_custom_call.1} parent=1 // pred_check
      _
    $region3: #{tpu_custom_call.1} parent=1 // pred_check_branch
      %9 = sbr.rel (0) target = $region5
    $region4: #{tpu_custom_call.1} parent=1 // pred_region
      %s10 = sadd.s32 0, 0
      %s11 = smul.u32 2, %s10
      %s13 = ssub.s32 256, 256
      %14 = vsyncadd [#allocation3], %s13
      %s15 = smul.addr %s11, 128
      %s16 = scalar_lea.hbm %s0, %s15
      %s17 = sshll.u32 [#allocation2], 4
      %s18 = int_to_ptr.vmem [resolvable:$true] %s17
      %23 = dma.hbm_to_vmem [thread:$0]  %s16, 256, %s18, [#allocation3], 128, 128, 8
    $region5: #{tpu_custom_call.1} parent=1 // pred_fallthru
      _
    // Predicated region
    $region6: #{tpu_custom_call.1} parent=1 // pred_check
      _
    $region7: #{tpu_custom_call.1} parent=1 // pred_check_branch
      %25 = sbr.rel (0) target = $region9
    $region8: #{tpu_custom_call.1} parent=1 // pred_region
      %26 = dma.done [#allocation3], 256
    $region9: #{tpu_custom_call.1} parent=1 // pred_fallthru
      _
    %s27 = sadd.s32 0, 0
    %s28 = smul.u32 2, %s27
    %p29 = scmp.eq.s32.totalorder 0, 0
    // Predicated region
    $region10: #{tpu_custom_call.1} parent=1 // pred_check
      %p30 = pneg %p29
    $region11: #{tpu_custom_call.1} parent=1 // pred_check_branch
      %32 = sbr.rel (%p30) target = $region13
    $region12: #{tpu_custom_call.1} parent=1 // pred_region
      %33 = vst [vmem:[#allocation5] sm:$0xff] 0.0
      %34 = vst [vmem:[#allocation5 + $0x8] sm:$0xff] 0.0
    $region13: #{tpu_custom_call.1} parent=1 // pred_fallthru
      _
    %s35 = sadd.s32 0, 0
    %v36 = vld [vmem:[#allocation2] sm:$0xff]
    %v37 = vld [vmem:[#allocation2 + $0x8] sm:$0xff]
    %v38 = vmax.f32 %v36, 0.0
    %v39 = vmax.f32 %v37, 0.0
    %v40 = vsub.f32 %v38, %v36
    %v41 = vsub.f32 %v39, %v37
    %v42 = vand.u32 2147483647, %v36
    %v43 = vand.u32 2147483647, %v37
    %v44 = vsub.f32 0.0, %v42
    %v45 = vsub.f32 0.0, %v43
    %v46 = vmul.f32 %v44, 1.442695
    %v47 = vpow.pop %v46
    %v48 = vmul.f32 %v45, 1.442695
    %v49 = vpow.pop %v48
    %v50 = vadd.f32 %v47, 1.0
    %v51 = vlog2.pop %v50
    %v52 = vmul.f32 %v51, 0.6931472
    %v53 = vmul.f32 -0.5, %v47
    %v54 = vadd.f32 %v53, 1.0
    %v55 = vmul.f32 %v54, %v47
    %v56 = vand.u32 2147483647, %v47
    %vm57 = vcmp.lt.f32.partialorder %v56, 0.0004427343
    %v58 = vsel %vm57, %v55, %v52
    %v59 = vadd.f32 %v49, 1.0
    %v60 = vlog2.pop %v59
    %v61 = vmul.f32 %v60, 0.6931472
    %v62 = vmul.f32 -0.5, %v49
    %v63 = vadd.f32 %v62, 1.0
    %v64 = vmul.f32 %v63, %v49
    %v65 = vand.u32 2147483647, %v49
    %vm66 = vcmp.lt.f32.partialorder %v65, 0.0004427343
    %v67 = vsel %vm66, %v64, %v61
    %v68 = vadd.f32 %v40, %v58
    %v69 = vadd.f32 %v41, %v67
    %s70 = smul.u32 %s35, 2048
    %s71 = sadd.s32 %s70, 2048
    %p72 = scmp.le.s32.totalorder %s71, 2048
    // Predicated region
    $region14: #{tpu_custom_call.1} parent=1 // pred_check
      %p73 = pneg %p72
    $region15: #{tpu_custom_call.1} parent=1 // pred_check_branch
      %75 = sbr.rel (%p73) target = $region17
    $region16: #{tpu_custom_call.1} parent=1 // pred_region
      %v76 = vld [vmem:[#allocation5] sm:$0xff]
      %v77 = vld [vmem:[#allocation5 + $0x8] sm:$0xff]
      %v78 = vadd.f32 %v68, 0.0
      %v79 = vadd.f32 %v69, 0.0
      %v80 = vadd.f32 %v76, %v78
      %v81 = vadd.f32 %v77, %v79
      %82 = vst [vmem:[#allocation5] sm:$0xff] %v80
      %83 = vst [vmem:[#allocation5 + $0x8] sm:$0xff] %v81
    $region17: #{tpu_custom_call.1} parent=1 // pred_fallthru
      _
    %p84 = scmp.gt.s32.totalorder %s71, 2048
    // Predicated region
    $region18: #{tpu_custom_call.1} parent=1 // pred_check
      %p85 = pneg %p84
    $region19: #{tpu_custom_call.1} parent=1 // pred_check_branch
      %87 = sbr.rel (%p85) target = $region21
    $region20: #{tpu_custom_call.1} parent=1 // pred_region
      %s88 = smul.u32 %s35, 16
      %v89 = vlaneseq
      %v90 = vshrl.u32 %v89, 7
      %v91 = vadd.s32 %v90, 8
      %v92 = vstv %s88
      %v93 = vadd.s32 %v92, %v90
      %v94 = vadd.s32 %v92, %v91
      %v95 = vlaneseq
      %v96 = vand.u32 %v95, 127
      %vm97 = vcmp.lt.s32.totalorder %v93, 16
      %vm98 = vcmp.lt.s32.totalorder %v94, 16
      %vm99 = vcmp.eq.s32.totalorder %v93, 16
      %vm100 = vcmp.eq.s32.totalorder %v94, 16
      %vm101 = vcmp.lt.s32.totalorder %v96, 0
      %v102 = vsel %vm99, 1, 0
      %v103 = vsel %vm100, 1, 0
      %vm104 = vcmp.eq.s32.totalorder %v102, 1
      %vm105 = vcmp.eq.s32.totalorder %v103, 1
      %v106 = vsel %vm101, 1, 0
      %vm107 = vcmp.eq.s32.totalorder %v106, 1
      %vm108 = vmand %vm104, %vm107
      %vm109 = vmand %vm105, %vm107
      %v110 = vsel %vm97, 1, 0
      %v111 = vsel %vm98, 1, 0
      %vm112 = vcmp.eq.s32.totalorder %v110, 1
      %vm113 = vcmp.eq.s32.totalorder %v111, 1
      %vm114 = vmor %vm112, %vm108
      %vm115 = vmor %vm113, %vm109
      %v116 = vld [vmem:[#allocation5] sm:$0xff]
      %v117 = vld [vmem:[#allocation5 + $0x8] sm:$0xff]
      %v118 = vsel %vm114, %v68, 0.0
      %v119 = vsel %vm115, %v69, 0.0
      %v120 = vadd.f32 %v118, 0.0
      %v121 = vadd.f32 %v119, 0.0
      %v122 = vadd.f32 %v116, %v120
      %v123 = vadd.f32 %v117, %v121
      %124 = vst [vmem:[#allocation5] sm:$0xff] %v122
      %125 = vst [vmem:[#allocation5 + $0x8] sm:$0xff] %v123
    $region21: #{tpu_custom_call.1} parent=1 // pred_fallthru
      _
    // Predicated region
    $region22: #{tpu_custom_call.1} parent=1 // pred_check
      _
    $region23: #{tpu_custom_call.1} parent=1 // pred_check_branch
      %127 = sbr.rel (0) target = $region25
    $region24: #{tpu_custom_call.1} parent=1 // pred_region
      %s129 = ssub.s32 256, 256
      %130 = vsyncadd [#allocation4], %s129
      %s131 = sshll.u32 [#allocation5], 4
      %s132 = int_to_ptr.vmem [resolvable:$true] %s131
      %137 = dma.vmem_to_hbm [thread:$0]  %s132, 256, %s1, [#allocation4], 128, 128, 8
    $region25: #{tpu_custom_call.1} parent=1 // pred_fallthru
      _
    // Predicated region
    $region26: #{tpu_custom_call.1} parent=1 // pred_check
      _
    $region27: #{tpu_custom_call.1} parent=1 // pred_check_branch
      %139 = sbr.rel (0) target = $region29
    $region28: #{tpu_custom_call.1} parent=1 // pred_region
      %140 = dma.done [#allocation4], 256
    $region29: #{tpu_custom_call.1} parent=1 // pred_fallthru
      _
    %141 = vsyncpa [#allocation3], 1
    %142 = vsyncpa [#allocation4], 1

</llo_original>
